<compile_context>
chip_gen: v5e
topology: v5e:2x2
jax: 0.10.0
libtpu: 0.0.40
codegen_flags: <defaults>
</compile_context>

<pallas_src>
import functools

import jax
import jax.numpy as jnp
import numpy as np
from jax.experimental import pallas as pl
from jax.experimental.pallas import tpu as pltpu

_VMEM_BLOCK_BUDGET = 20 * 1024 * 1024   # double-buffered in+out blocks
_VMEM_LIMIT_BYTES = 32 * 1024 * 1024    # scoped limit: safe on v5e/v6e/v7x


def _select_group_rows(nph, npw, ps, H, W, C, NP, itemsize, batch):
    """Largest divisor g of nph (patch rows per grid step) such that the
    dtype-aware sublane alignment rule holds and the double-buffered
    input+output blocks fit the VMEM budget."""
    sub = 8 * max(1, 4 // itemsize)      # f32: 8, bf16: 16, int8/fp8: 32 sublanes

    def aligned(g):
        in_rows, out_rows = g * ps, g * npw
        return ((in_rows % sub == 0 or in_rows == H) and
                (out_rows % sub == 0 or out_rows == NP))

    def fits(g):
        blk_bytes = C * g * ps * W * itemsize        # in block == out block bytes
        return 2 * 2 * blk_bytes <= _VMEM_BLOCK_BUDGET   # 2 blocks, double-buffered

    divisors = [d for d in range(1, nph + 1) if nph % d == 0]
    ok_align = [g for g in divisors if aligned(g)]   # always contains nph (full dims)
    ok_both = [g for g in ok_align if fits(g)]
    if not ok_both:
        # Even one patch row over-fills the budget (very wide images).
        # TODO(synk): also tile along W in that case.
        return min(ok_align)
    # Prefer >= 2 total grid blocks so v7x megacore can shard the grid.
    preferred = [g for g in ok_both if batch * (nph // g) >= 2] or ok_both
    return max(preferred)


def _patchify_kernel(x_ref, o_ref, *, C, ps, npw, g):
    """x_ref: (1, C, g*ps, W); o_ref: (1, g*npw, D) with D = C*ps*ps.

    For each patch row r in the group: load one full-width (ps, W) slab per
    channel, assemble every patch's D-wide output row in registers with lane
    concatenation (flatten order (c, ph, pw)), and emit a single lane-dense
    (npw, D) store for the whole patch row.
    """
    @pl.loop(0, g)
    def _(r):
        # Full-width, multi-sublane loads (one per channel).
        slabs = [x_ref[0, c, pl.ds(r * ps, ps), :] for c in range(C)]   # C x (ps, W)
        rows = []
        for j in range(npw):
            per_c = []
            for c in range(C):
                blk = slabs[c][:, j * ps:(j + 1) * ps]                  # (ps, ps)
                per_c.append(jnp.concatenate(
                    [blk[ph:ph + 1, :] for ph in range(ps)], axis=1))   # (1, ps*ps)
            rows.append(jnp.concatenate(per_c, axis=1))                 # (1, D)
        block = jnp.concatenate(rows, axis=0)                           # (npw, D)
        o_ref[0, pl.ds(r * npw, npw), :] = block


def patchify_pallas(x, patch_size):
    """Pallas equivalent of PatchEmbedding.forward / patchify."""
    B, C, H, W = x.shape
    ps = patch_size
    assert H % ps == 0 and W % ps == 0, (
        "Image dimensions must be divisible by the patch size.")
    nph, npw = H // ps, W // ps
    NP = nph * npw
    D = C * ps * ps

    g = _select_group_rows(nph, npw, ps, H, W, C, NP, x.dtype.itemsize, B)
    n_groups = nph // g

    kernel = functools.partial(_patchify_kernel, C=C, ps=ps, npw=npw, g=g)

    return pl.pallas_call(
        kernel,
        out_shape=jax.ShapeDtypeStruct((B, NP, D), x.dtype),
        grid_spec=pltpu.PrefetchScalarGridSpec(
            num_scalar_prefetch=0,
            grid=(B, n_groups),
            in_specs=[
                pl.BlockSpec((1, C, g * ps, W), lambda b, t: (b, 0, t, 0)),
            ],
            out_specs=pl.BlockSpec((1, g * npw, D), lambda b, t: (b, t, 0)),
        ),
        compiler_params=pltpu.CompilerParams(
            dimension_semantics=("parallel", "parallel"),
            vmem_limit_bytes=_VMEM_LIMIT_BYTES,
        ),
    )(x)


def patchify_reference(x, patch_size):
    """Pure-JAX reference matching the PyTorch semantics exactly."""
    B, C, H, W = x.shape
    ps = patch_size
    nph, npw = H // ps, W // ps
    x = x.reshape(B, C, nph, ps, npw, ps)
    x = jnp.transpose(x, (0, 2, 4, 1, 3, 5))       # (B, nph, npw, C, ps, ps)
    return x.reshape(B, nph * npw, C * ps * ps)


if __name__ == "__main__":
    # Small shapes consistent with the module: batch=2, channels=4,
    # spatial=16x16, patch_size=4 -> 16 patches of dim 4*4*4=64.
    patch_size = 4
    embed_dim = 32  # declared by the module but unused in forward()

    key = jax.random.PRNGKey(0)
    x = jax.random.normal(key, (2, 4, 16, 16), dtype=jnp.float32)

    out = patchify_pallas(x, patch_size)
    out = jax.block_until_ready(out)

    ref = patchify_reference(x, patch_size)
    np.testing.assert_allclose(np.asarray(out), np.asarray(ref), rtol=0, atol=0)

    print("KERNEL_OK")
</pallas_src>

<mosaic_0001>
module attributes {stable_mosaic.version = 11 : i64} {
  func.func @_patchify_kernel(%arg0: i32, %arg1: i32, %arg2: memref<1x4x16x16xf32, #tpu.memory_space<vmem>>, %arg3: memref<1x16x64xf32, #tpu.memory_space<vmem>>) attributes {dimension_semantics = [#tpu.dimension_semantics<parallel>, #tpu.dimension_semantics<parallel>], iteration_bounds = array<i64: 2, 1>, scalar_prefetch = 0 : i64, scratch_operands = 0 : i64, tpu.core_type = #tpu.core_type<tc>, window_params = [{transform_indices = @transform_0, window_bounds = array<i64: 1, 4, 16, 16>}, {transform_indices = @transform_1, window_bounds = array<i64: 1, 16, 64>}]} {
    %c0_i32 = arith.constant 0 : i32
    %c4_i32 = arith.constant 4 : i32
    %0 = arith.addi %c0_i32, %c4_i32 : i32
    %c1_i32 = arith.constant 1 : i32
    scf.for %arg4 = %c0_i32 to %0 step %c1_i32  : i32 {
      %c1_i32_1 = arith.constant 1 : i32
      %1 = arith.muli %arg4, %c1_i32_1 : i32
      %c0_i32_2 = arith.constant 0 : i32
      %2 = arith.addi %c0_i32_2, %1 : i32
      %c4_i32_3 = arith.constant 4 : i32
      %3 = arith.muli %2, %c4_i32_3 : i32
      %c0 = arith.constant 0 : index
      %c0_4 = arith.constant 0 : index
      %4 = arith.index_cast %3 : i32 to index
      %c0_5 = arith.constant 0 : index
      %5 = vector.load %arg2[%c0, %c0_4, %4, %c0_5] : memref<1x4x16x16xf32, #tpu.memory_space<vmem>>, vector<1x1x4x16xf32>
      %6 = vector.shape_cast %5 : vector<1x1x4x16xf32> to vector<4x16xf32>
      %c4_i32_6 = arith.constant 4 : i32
      %7 = arith.muli %2, %c4_i32_6 : i32
      %c0_7 = arith.constant 0 : index
      %c1 = arith.constant 1 : index
      %8 = arith.index_cast %7 : i32 to index
      %c0_8 = arith.constant 0 : index
      %9 = vector.load %arg2[%c0_7, %c1, %8, %c0_8] : memref<1x4x16x16xf32, #tpu.memory_space<vmem>>, vector<1x1x4x16xf32>
      %10 = vector.shape_cast %9 : vector<1x1x4x16xf32> to vector<4x16xf32>
      %c4_i32_9 = arith.constant 4 : i32
      %11 = arith.muli %2, %c4_i32_9 : i32
      %c0_10 = arith.constant 0 : index
      %c2 = arith.constant 2 : index
      %12 = arith.index_cast %11 : i32 to index
      %c0_11 = arith.constant 0 : index
      %13 = vector.load %arg2[%c0_10, %c2, %12, %c0_11] : memref<1x4x16x16xf32, #tpu.memory_space<vmem>>, vector<1x1x4x16xf32>
      %14 = vector.shape_cast %13 : vector<1x1x4x16xf32> to vector<4x16xf32>
      %c4_i32_12 = arith.constant 4 : i32
      %15 = arith.muli %2, %c4_i32_12 : i32
      %c0_13 = arith.constant 0 : index
      %c3 = arith.constant 3 : index
      %16 = arith.index_cast %15 : i32 to index
      %c0_14 = arith.constant 0 : index
      %17 = vector.load %arg2[%c0_13, %c3, %16, %c0_14] : memref<1x4x16x16xf32, #tpu.memory_space<vmem>>, vector<1x1x4x16xf32>
      %18 = vector.shape_cast %17 : vector<1x1x4x16xf32> to vector<4x16xf32>
      %19 = vector.extract_strided_slice %6 {offsets = [0, 0], sizes = [4, 4], strides = [1, 1]} : vector<4x16xf32> to vector<4x4xf32>
      %20 = vector.extract_strided_slice %19 {offsets = [0, 0], sizes = [1, 4], strides = [1, 1]} : vector<4x4xf32> to vector<1x4xf32>
      %21 = vector.extract_strided_slice %19 {offsets = [1, 0], sizes = [1, 4], strides = [1, 1]} : vector<4x4xf32> to vector<1x4xf32>
      %22 = vector.extract_strided_slice %19 {offsets = [2, 0], sizes = [1, 4], strides = [1, 1]} : vector<4x4xf32> to vector<1x4xf32>
      %23 = vector.extract_strided_slice %19 {offsets = [3, 0], sizes = [1, 4], strides = [1, 1]} : vector<4x4xf32> to vector<1x4xf32>
      %24 = tpu.concatenate %20, %21, %22, %23 in 1 : vector<1x4xf32>, vector<1x4xf32>, vector<1x4xf32>, vector<1x4xf32> -> vector<1x16xf32>
      %25 = vector.extract_strided_slice %10 {offsets = [0, 0], sizes = [4, 4], strides = [1, 1]} : vector<4x16xf32> to vector<4x4xf32>
      %26 = vector.extract_strided_slice %25 {offsets = [0, 0], sizes = [1, 4], strides = [1, 1]} : vector<4x4xf32> to vector<1x4xf32>
      %27 = vector.extract_strided_slice %25 {offsets = [1, 0], sizes = [1, 4], strides = [1, 1]} : vector<4x4xf32> to vector<1x4xf32>
      %28 = vector.extract_strided_slice %25 {offsets = [2, 0], sizes = [1, 4], strides = [1, 1]} : vector<4x4xf32> to vector<1x4xf32>
      %29 = vector.extract_strided_slice %25 {offsets = [3, 0], sizes = [1, 4], strides = [1, 1]} : vector<4x4xf32> to vector<1x4xf32>
      %30 = tpu.concatenate %26, %27, %28, %29 in 1 : vector<1x4xf32>, vector<1x4xf32>, vector<1x4xf32>, vector<1x4xf32> -> vector<1x16xf32>
      %31 = vector.extract_strided_slice %14 {offsets = [0, 0], sizes = [4, 4], strides = [1, 1]} : vector<4x16xf32> to vector<4x4xf32>
      %32 = vector.extract_strided_slice %31 {offsets = [0, 0], sizes = [1, 4], strides = [1, 1]} : vector<4x4xf32> to vector<1x4xf32>
      %33 = vector.extract_strided_slice %31 {offsets = [1, 0], sizes = [1, 4], strides = [1, 1]} : vector<4x4xf32> to vector<1x4xf32>
      %34 = vector.extract_strided_slice %31 {offsets = [2, 0], sizes = [1, 4], strides = [1, 1]} : vector<4x4xf32> to vector<1x4xf32>
      %35 = vector.extract_strided_slice %31 {offsets = [3, 0], sizes = [1, 4], strides = [1, 1]} : vector<4x4xf32> to vector<1x4xf32>
      %36 = tpu.concatenate %32, %33, %34, %35 in 1 : vector<1x4xf32>, vector<1x4xf32>, vector<1x4xf32>, vector<1x4xf32> -> vector<1x16xf32>
      %37 = vector.extract_strided_slice %18 {offsets = [0, 0], sizes = [4, 4], strides = [1, 1]} : vector<4x16xf32> to vector<4x4xf32>
      %38 = vector.extract_strided_slice %37 {offsets = [0, 0], sizes = [1, 4], strides = [1, 1]} : vector<4x4xf32> to vector<1x4xf32>
      %39 = vector.extract_strided_slice %37 {offsets = [1, 0], sizes = [1, 4], strides = [1, 1]} : vector<4x4xf32> to vector<1x4xf32>
      %40 = vector.extract_strided_slice %37 {offsets = [2, 0], sizes = [1, 4], strides = [1, 1]} : vector<4x4xf32> to vector<1x4xf32>
      %41 = vector.extract_strided_slice %37 {offsets = [3, 0], sizes = [1, 4], strides = [1, 1]} : vector<4x4xf32> to vector<1x4xf32>
      %42 = tpu.concatenate %38, %39, %40, %41 in 1 : vector<1x4xf32>, vector<1x4xf32>, vector<1x4xf32>, vector<1x4xf32> -> vector<1x16xf32>
      %43 = tpu.concatenate %24, %30, %36, %42 in 1 : vector<1x16xf32>, vector<1x16xf32>, vector<1x16xf32>, vector<1x16xf32> -> vector<1x64xf32>
      %44 = vector.extract_strided_slice %6 {offsets = [0, 4], sizes = [4, 4], strides = [1, 1]} : vector<4x16xf32> to vector<4x4xf32>
      %45 = vector.extract_strided_slice %44 {offsets = [0, 0], sizes = [1, 4], strides = [1, 1]} : vector<4x4xf32> to vector<1x4xf32>
      %46 = vector.extract_strided_slice %44 {offsets = [1, 0], sizes = [1, 4], strides = [1, 1]} : vector<4x4xf32> to vector<1x4xf32>
      %47 = vector.extract_strided_slice %44 {offsets = [2, 0], sizes = [1, 4], strides = [1, 1]} : vector<4x4xf32> to vector<1x4xf32>
      %48 = vector.extract_strided_slice %44 {offsets = [3, 0], sizes = [1, 4], strides = [1, 1]} : vector<4x4xf32> to vector<1x4xf32>
      %49 = tpu.concatenate %45, %46, %47, %48 in 1 : vector<1x4xf32>, vector<1x4xf32>, vector<1x4xf32>, vector<1x4xf32> -> vector<1x16xf32>
      %50 = vector.extract_strided_slice %10 {offsets = [0, 4], sizes = [4, 4], strides = [1, 1]} : vector<4x16xf32> to vector<4x4xf32>
      %51 = vector.extract_strided_slice %50 {offsets = [0, 0], sizes = [1, 4], strides = [1, 1]} : vector<4x4xf32> to vector<1x4xf32>
      %52 = vector.extract_strided_slice %50 {offsets = [1, 0], sizes = [1, 4], strides = [1, 1]} : vector<4x4xf32> to vector<1x4xf32>
      %53 = vector.extract_strided_slice %50 {offsets = [2, 0], sizes = [1, 4], strides = [1, 1]} : vector<4x4xf32> to vector<1x4xf32>
      %54 = vector.extract_strided_slice %50 {offsets = [3, 0], sizes = [1, 4], strides = [1, 1]} : vector<4x4xf32> to vector<1x4xf32>
      %55 = tpu.concatenate %51, %52, %53, %54 in 1 : vector<1x4xf32>, vector<1x4xf32>, vector<1x4xf32>, vector<1x4xf32> -> vector<1x16xf32>
      %56 = vector.extract_strided_slice %14 {offsets = [0, 4], sizes = [4, 4], strides = [1, 1]} : vector<4x16xf32> to vector<4x4xf32>
      %57 = vector.extract_strided_slice %56 {offsets = [0, 0], sizes = [1, 4], strides = [1, 1]} : vector<4x4xf32> to vector<1x4xf32>
      %58 = vector.extract_strided_slice %56 {offsets = [1, 0], sizes = [1, 4], strides = [1, 1]} : vector<4x4xf32> to vector<1x4xf32>
      %59 = vector.extract_strided_slice %56 {offsets = [2, 0], sizes = [1, 4], strides = [1, 1]} : vector<4x4xf32> to vector<1x4xf32>
      %60 = vector.extract_strided_slice %56 {offsets = [3, 0], sizes = [1, 4], strides = [1, 1]} : vector<4x4xf32> to vector<1x4xf32>
      %61 = tpu.concatenate %57, %58, %59, %60 in 1 : vector<1x4xf32>, vector<1x4xf32>, vector<1x4xf32>, vector<1x4xf32> -> vector<1x16xf32>
      %62 = vector.extract_strided_slice %18 {offsets = [0, 4], sizes = [4, 4], strides = [1, 1]} : vector<4x16xf32> to vector<4x4xf32>
      %63 = vector.extract_strided_slice %62 {offsets = [0, 0], sizes = [1, 4], strides = [1, 1]} : vector<4x4xf32> to vector<1x4xf32>
      %64 = vector.extract_strided_slice %62 {offsets = [1, 0], sizes = [1, 4], strides = [1, 1]} : vector<4x4xf32> to vector<1x4xf32>
      %65 = vector.extract_strided_slice %62 {offsets = [2, 0], sizes = [1, 4], strides = [1, 1]} : vector<4x4xf32> to vector<1x4xf32>
      %66 = vector.extract_strided_slice %62 {offsets = [3, 0], sizes = [1, 4], strides = [1, 1]} : vector<4x4xf32> to vector<1x4xf32>
      %67 = tpu.concatenate %63, %64, %65, %66 in 1 : vector<1x4xf32>, vector<1x4xf32>, vector<1x4xf32>, vector<1x4xf32> -> vector<1x16xf32>
      %68 = tpu.concatenate %49, %55, %61, %67 in 1 : vector<1x16xf32>, vector<1x16xf32>, vector<1x16xf32>, vector<1x16xf32> -> vector<1x64xf32>
      %69 = vector.extract_strided_slice %6 {offsets = [0, 8], sizes = [4, 4], strides = [1, 1]} : vector<4x16xf32> to vector<4x4xf32>
      %70 = vector.extract_strided_slice %69 {offsets = [0, 0], sizes = [1, 4], strides = [1, 1]} : vector<4x4xf32> to vector<1x4xf32>
      %71 = vector.extract_strided_slice %69 {offsets = [1, 0], sizes = [1, 4], strides = [1, 1]} : vector<4x4xf32> to vector<1x4xf32>
      %72 = vector.extract_strided_slice %69 {offsets = [2, 0], sizes = [1, 4], strides = [1, 1]} : vector<4x4xf32> to vector<1x4xf32>
      %73 = vector.extract_strided_slice %69 {offsets = [3, 0], sizes = [1, 4], strides = [1, 1]} : vector<4x4xf32> to vector<1x4xf32>
      %74 = tpu.concatenate %70, %71, %72, %73 in 1 : vector<1x4xf32>, vector<1x4xf32>, vector<1x4xf32>, vector<1x4xf32> -> vector<1x16xf32>
      %75 = vector.extract_strided_slice %10 {offsets = [0, 8], sizes = [4, 4], strides = [1, 1]} : vector<4x16xf32> to vector<4x4xf32>
      %76 = vector.extract_strided_slice %75 {offsets = [0, 0], sizes = [1, 4], strides = [1, 1]} : vector<4x4xf32> to vector<1x4xf32>
      %77 = vector.extract_strided_slice %75 {offsets = [1, 0], sizes = [1, 4], strides = [1, 1]} : vector<4x4xf32> to vector<1x4xf32>
      %78 = vector.extract_strided_slice %75 {offsets = [2, 0], sizes = [1, 4], strides = [1, 1]} : vector<4x4xf32> to vector<1x4xf32>
      %79 = vector.extract_strided_slice %75 {offsets = [3, 0], sizes = [1, 4], strides = [1, 1]} : vector<4x4xf32> to vector<1x4xf32>
      %80 = tpu.concatenate %76, %77, %78, %79 in 1 : vector<1x4xf32>, vector<1x4xf32>, vector<1x4xf32>, vector<1x4xf32> -> vector<1x16xf32>
      %81 = vector.extract_strided_slice %14 {offsets = [0, 8], sizes = [4, 4], strides = [1, 1]} : vector<4x16xf32> to vector<4x4xf32>
      %82 = vector.extract_strided_slice %81 {offsets = [0, 0], sizes = [1, 4], strides = [1, 1]} : vector<4x4xf32> to vector<1x4xf32>
      %83 = vector.extract_strided_slice %81 {offsets = [1, 0], sizes = [1, 4], strides = [1, 1]} : vector<4x4xf32> to vector<1x4xf32>
      %84 = vector.extract_strided_slice %81 {offsets = [2, 0], sizes = [1, 4], strides = [1, 1]} : vector<4x4xf32> to vector<1x4xf32>
      %85 = vector.extract_strided_slice %81 {offsets = [3, 0], sizes = [1, 4], strides = [1, 1]} : vector<4x4xf32> to vector<1x4xf32>
      %86 = tpu.concatenate %82, %83, %84, %85 in 1 : vector<1x4xf32>, vector<1x4xf32>, vector<1x4xf32>, vector<1x4xf32> -> vector<1x16xf32>
      %87 = vector.extract_strided_slice %18 {offsets = [0, 8], sizes = [4, 4], strides = [1, 1]} : vector<4x16xf32> to vector<4x4xf32>
      %88 = vector.extract_strided_slice %87 {offsets = [0, 0], sizes = [1, 4], strides = [1, 1]} : vector<4x4xf32> to vector<1x4xf32>
      %89 = vector.extract_strided_slice %87 {offsets = [1, 0], sizes = [1, 4], strides = [1, 1]} : vector<4x4xf32> to vector<1x4xf32>
      %90 = vector.extract_strided_slice %87 {offsets = [2, 0], sizes = [1, 4], strides = [1, 1]} : vector<4x4xf32> to vector<1x4xf32>
      %91 = vector.extract_strided_slice %87 {offsets = [3, 0], sizes = [1, 4], strides = [1, 1]} : vector<4x4xf32> to vector<1x4xf32>
      %92 = tpu.concatenate %88, %89, %90, %91 in 1 : vector<1x4xf32>, vector<1x4xf32>, vector<1x4xf32>, vector<1x4xf32> -> vector<1x16xf32>
      %93 = tpu.concatenate %74, %80, %86, %92 in 1 : vector<1x16xf32>, vector<1x16xf32>, vector<1x16xf32>, vector<1x16xf32> -> vector<1x64xf32>
      %94 = vector.extract_strided_slice %6 {offsets = [0, 12], sizes = [4, 4], strides = [1, 1]} : vector<4x16xf32> to vector<4x4xf32>
      %95 = vector.extract_strided_slice %94 {offsets = [0, 0], sizes = [1, 4], strides = [1, 1]} : vector<4x4xf32> to vector<1x4xf32>
      %96 = vector.extract_strided_slice %94 {offsets = [1, 0], sizes = [1, 4], strides = [1, 1]} : vector<4x4xf32> to vector<1x4xf32>
      %97 = vector.extract_strided_slice %94 {offsets = [2, 0], sizes = [1, 4], strides = [1, 1]} : vector<4x4xf32> to vector<1x4xf32>
      %98 = vector.extract_strided_slice %94 {offsets = [3, 0], sizes = [1, 4], strides = [1, 1]} : vector<4x4xf32> to vector<1x4xf32>
      %99 = tpu.concatenate %95, %96, %97, %98 in 1 : vector<1x4xf32>, vector<1x4xf32>, vector<1x4xf32>, vector<1x4xf32> -> vector<1x16xf32>
      %100 = vector.extract_strided_slice %10 {offsets = [0, 12], sizes = [4, 4], strides = [1, 1]} : vector<4x16xf32> to vector<4x4xf32>
      %101 = vector.extract_strided_slice %100 {offsets = [0, 0], sizes = [1, 4], strides = [1, 1]} : vector<4x4xf32> to vector<1x4xf32>
      %102 = vector.extract_strided_slice %100 {offsets = [1, 0], sizes = [1, 4], strides = [1, 1]} : vector<4x4xf32> to vector<1x4xf32>
      %103 = vector.extract_strided_slice %100 {offsets = [2, 0], sizes = [1, 4], strides = [1, 1]} : vector<4x4xf32> to vector<1x4xf32>
      %104 = vector.extract_strided_slice %100 {offsets = [3, 0], sizes = [1, 4], strides = [1, 1]} : vector<4x4xf32> to vector<1x4xf32>
      %105 = tpu.concatenate %101, %102, %103, %104 in 1 : vector<1x4xf32>, vector<1x4xf32>, vector<1x4xf32>, vector<1x4xf32> -> vector<1x16xf32>
      %106 = vector.extract_strided_slice %14 {offsets = [0, 12], sizes = [4, 4], strides = [1, 1]} : vector<4x16xf32> to vector<4x4xf32>
      %107 = vector.extract_strided_slice %106 {offsets = [0, 0], sizes = [1, 4], strides = [1, 1]} : vector<4x4xf32> to vector<1x4xf32>
      %108 = vector.extract_strided_slice %106 {offsets = [1, 0], sizes = [1, 4], strides = [1, 1]} : vector<4x4xf32> to vector<1x4xf32>
      %109 = vector.extract_strided_slice %106 {offsets = [2, 0], sizes = [1, 4], strides = [1, 1]} : vector<4x4xf32> to vector<1x4xf32>
      %110 = vector.extract_strided_slice %106 {offsets = [3, 0], sizes = [1, 4], strides = [1, 1]} : vector<4x4xf32> to vector<1x4xf32>
      %111 = tpu.concatenate %107, %108, %109, %110 in 1 : vector<1x4xf32>, vector<1x4xf32>, vector<1x4xf32>, vector<1x4xf32> -> vector<1x16xf32>
      %112 = vector.extract_strided_slice %18 {offsets = [0, 12], sizes = [4, 4], strides = [1, 1]} : vector<4x16xf32> to vector<4x4xf32>
      %113 = vector.extract_strided_slice %112 {offsets = [0, 0], sizes = [1, 4], strides = [1, 1]} : vector<4x4xf32> to vector<1x4xf32>
      %114 = vector.extract_strided_slice %112 {offsets = [1, 0], sizes = [1, 4], strides = [1, 1]} : vector<4x4xf32> to vector<1x4xf32>
      %115 = vector.extract_strided_slice %112 {offsets = [2, 0], sizes = [1, 4], strides = [1, 1]} : vector<4x4xf32> to vector<1x4xf32>
      %116 = vector.extract_strided_slice %112 {offsets = [3, 0], sizes = [1, 4], strides = [1, 1]} : vector<4x4xf32> to vector<1x4xf32>
      %117 = tpu.concatenate %113, %114, %115, %116 in 1 : vector<1x4xf32>, vector<1x4xf32>, vector<1x4xf32>, vector<1x4xf32> -> vector<1x16xf32>
      %118 = tpu.concatenate %99, %105, %111, %117 in 1 : vector<1x16xf32>, vector<1x16xf32>, vector<1x16xf32>, vector<1x16xf32> -> vector<1x64xf32>
      %119 = tpu.concatenate %43, %68, %93, %118 in 0 : vector<1x64xf32>, vector<1x64xf32>, vector<1x64xf32>, vector<1x64xf32> -> vector<4x64xf32>
      %c4_i32_15 = arith.constant 4 : i32
      %120 = arith.muli %2, %c4_i32_15 : i32
      %c0_16 = arith.constant 0 : index
      %121 = arith.index_cast %120 : i32 to index
      %c0_17 = arith.constant 0 : index
      %122 = vector.load %arg3[%c0_16, %121, %c0_17] : memref<1x16x64xf32, #tpu.memory_space<vmem>>, vector<1x4x64xf32>
      %123 = vector.shape_cast %122 : vector<1x4x64xf32> to vector<4x64xf32>
      %124 = vector.shape_cast %119 : vector<4x64xf32> to vector<1x4x64xf32>
      tpu.vector_store %arg3[%c0_16, %121, %c0_17], %124 {strides = array<i32>} : memref<1x16x64xf32, #tpu.memory_space<vmem>>, vector<1x4x64xf32>,
    }
    %c4_i32_0 = arith.constant 4 : i32
    return
  }
  func.func @transform_0(%arg0: i32, %arg1: i32) -> (i32, i32, i32, i32) {
    %c0_i32 = arith.constant 0 : i32
    %c0_i32_0 = arith.constant 0 : i32
    %c0_i32_1 = arith.constant 0 : i32
    return %arg0, %c0_i32, %arg1, %c0_i32_0 : i32, i32, i32, i32
  }
  func.func @transform_1(%arg0: i32, %arg1: i32) -> (i32, i32, i32) {
    %c0_i32 = arith.constant 0 : i32
    %c0_i32_0 = arith.constant 0 : i32
    return %arg0, %arg1, %c0_i32 : i32, i32, i32
  }
}

</mosaic_0001>

<llo_original>
// kernel: tpu_custom_call.1
$region0: #{tpu_custom_call.1}
  #allocation0 [shape = 'u32[]', space=smem, size = 0x4, offset = 0x4, fixed_abs, tag = 'smem constant byte address 0x4 - core index']
  #allocation1 [shape = 'u32[72,128]{1,0:T(1,128)}', space=vmem, size = 0x9000, scoped, tag = 'internal scratch']
  %s0 = inlined_call_operand.hbm [shape: f32[2,4,16,16], index: 0, kind: input, shape index: {}]
  %s1 = inlined_call_operand.hbm [shape: f32[2,16,64], index: 1, kind: output, shape index: {}]
  %s2 = sld [smem:[#allocation0]]
  $region48: #{tpu_custom_call.1} parent=0
    _
  %s4 = ssub.s32 1, %s2
  %s5 = scalar_select 0, %s4, %s2
  $region1: #{tpu_custom_call.1} parent=0
    #allocation2 [shape = 'u8[65536]{0}', space=vmem, size = 0x10000, scoped, tag = 'input window, operand 0']
    #allocation3 [shape = 's32[2]{0}', space=sflag, size = 0x8, scoped, tag = 'scoped memory for tpu_custom_call.1']
    #allocation4 [shape = 's32[2]{0}', space=sflag, size = 0x8, scoped, tag = 'scoped memory for tpu_custom_call.1']
    #allocation5 [shape = 'u8[16384]{0}', space=vmem, size = 0x4000, scoped, tag = 'output window, operand 0']
    %6 = vsyncpa [#allocation3], 0
    %s7 = scalar_lea.sflag [#allocation3], 1
    %8 = vsyncpa %s7, 0
    %9 = vsyncpa [#allocation4], 0
    %s10 = scalar_lea.sflag [#allocation4], 1
    %11 = vsyncpa %s10, 0
    loop: start=0, step=1, limit=4
    $region2: #{tpu_custom_call.1} parent=1 // loop_pre_header
      _
    $region3: #{tpu_custom_call.1} parent=1 // loop_header
      %s13 = sphi 0, %s17
      %p14 = scmp.ge.s32.totalorder %s13, 4
      %s20 = sphi 0, %s32
      %s21 = sphi 0, %s28
      %s22 = sphi 0, %s20
      %s23 = sphi 0, %s21
      %s24 = sphi 0, %s22
      %s25 = sphi 0, %s23
      %s37 = sphi 0, %s39
      %s40 = sphi 0, %s37
      %s41 = sphi 0, %s40
      %s57 = sphi 0, %s41
      %s65 = sphi 0, %s67
      %s68 = sphi 0, %s65
      %s69 = sphi 0, %s68
      %s85 = sphi 0, %s69
    $region4: #{tpu_custom_call.1} parent=1 // loop_header_branch
      %16 = sbr.rel (%p14) target = $region8
    $region5: #{tpu_custom_call.1} parent=1 // loop_body
      %s18 = ssub.s32 %s13, 1
      %s19 = ssub.s32 %s13, 2
      %s26 = sadd.s32 1, %s21
      %p27 = scmp.ge.s32.totalorder %s26, 1
      %s28 = scalar_select %p27, 0, %s26
      %s29 = sadd.s32 1, %s20
      %s30 = scalar_select %p27, %s29, %s20
      %p31 = scmp.ge.s32.totalorder %s30, 2
      %s32 = scalar_select %p31, 0, %s30
      %s33 = ssub.s32 %s20, %s32
      %s34 = ssub.s32 %s21, %s28
      %s35 = sor.u32 %s33, %s34
      %p36 = scmp.eq.s32.totalorder %s35, 0
      %s38 = sadd.s32 %s37, 1
      %s39 = scalar_select %p36, %s37, %s38
      %p42 = pneg %p36
      %p43 = scmp.eq.s32.totalorder %s13, 1
      %p44 = por %p42, %p43
      %p45 = scmp.ne.s32.totalorder %s37, %s40
      %p46 = scmp.eq.s32.totalorder %s13, 0
      %p47 = por %p45, %p46
      %p48 = scmp.ne.s32.totalorder %s37, %s40
      %p49 = scmp.eq.s32.totalorder %s18, 1
      %p50 = por %p48, %p49
      %p51 = scmp.ne.s32.totalorder %s40, %s41
      %p52 = scmp.eq.s32.totalorder %s18, 0
      %p53 = por %p51, %p52
      %p54 = scmp.ne.s32.totalorder %s40, %s41
      %p55 = scmp.eq.s32.totalorder %s19, 1
      %p56 = por %p54, %p55
      %p58 = scmp.ne.s32.totalorder %s41, %s57
      %p59 = scmp.eq.s32.totalorder %s19, 0
      %p60 = por %p58, %p59
      %s61 = ssub.s32 %s20, %s32
      %s62 = ssub.s32 %s21, %s28
      %s63 = sor.u32 %s61, %s62
      %p64 = scmp.eq.s32.totalorder %s63, 0
      %s66 = sadd.s32 %s65, 1
      %s67 = scalar_select %p64, %s65, %s66
      %p70 = pneg %p64
      %p71 = scmp.eq.s32.totalorder %s13, 1
      %p72 = por %p70, %p71
      %p73 = scmp.ne.s32.totalorder %s65, %s68
      %p74 = scmp.eq.s32.totalorder %s13, 0
      %p75 = por %p73, %p74
      %p76 = scmp.ne.s32.totalorder %s65, %s68
      %p77 = scmp.eq.s32.totalorder %s18, 1
      %p78 = por %p76, %p77
      %p79 = scmp.ne.s32.totalorder %s68, %s69
      %p80 = scmp.eq.s32.totalorder %s18, 0
      %p81 = por %p79, %p80
      %p82 = scmp.ne.s32.totalorder %s68, %s69
      %p83 = scmp.eq.s32.totalorder %s19, 1
      %p84 = por %p82, %p83
      %p86 = scmp.ne.s32.totalorder %s69, %s85
      %p87 = scmp.eq.s32.totalorder %s19, 0
      %p88 = por %p86, %p87
      %p89 = scmp.le.s32.totalorder 1, %s13
      %p90 = scmp.lt.s32.totalorder %s13, 3
      %p91 = pnand %p89, %p90
      %p92 = pneg %p91
      // Predicated region
      $region9: #{tpu_custom_call.1} parent=5 // pred_check
        _
      $region10: #{tpu_custom_call.1} parent=5 // pred_check_branch
        %94 = sbr.rel (%p91) target = $region12
      $region11: #{tpu_custom_call.1} parent=5 // pred_region
        %s95 = ssub.s32 %s13, 1
      $region12: #{tpu_custom_call.1} parent=5 // pred_fallthru
        _
      %p96 = scmp.lt.s32.totalorder %s13, 2
      // Predicated region
      $region13: #{tpu_custom_call.1} parent=5 // pred_check
        %p97 = pneg %p96
      $region14: #{tpu_custom_call.1} parent=5 // pred_check_branch
        %99 = sbr.rel (%p97) target = $region16
      $region15: #{tpu_custom_call.1} parent=5 // pred_region
        // Predicated region
        $region17: #{tpu_custom_call.1} parent=15 // pred_check
          %p100 = pneg %p47
        $region18: #{tpu_custom_call.1} parent=15 // pred_check_branch
          %102 = sbr.rel (%p100) target = $region20
        $region19: #{tpu_custom_call.1} parent=15 // pred_region
          %s103 = sand.u32 %s37, 1
          %s104 = scalar_lea.sflag [#allocation3], %s103
          %s105 = sand.u32 %s37, 1
          %s106 = smul.addr %s105, 64
          %s107 = scalar_lea.vmem [#allocation2], %s106
          %s108 = smul.u32 2, %s21
          %110 = vsyncadd %s104, 0
          %s111 = smul.addr %s20, 8
          %s112 = sadd.s32 %s108, %s111
          %s113 = smul.addr %s112, 8
          %s114 = scalar_lea.hbm %s0, %s113
          %s115 = sshll.u32 %s114, 4
          %s116 = int_to_ptr.hbm [resolvable:$true] %s115
          %s117 = sshll.u32 %s107, 4
          %s118 = int_to_ptr.vmem [resolvable:$true] %s117
          %123 = dma.hbm_to_vmem [thread:$0]  %s116, 1024, %s118, %s104, 128, 128, 8
        $region20: #{tpu_custom_call.1} parent=15 // pred_fallthru
          _
      $region16: #{tpu_custom_call.1} parent=5 // pred_fallthru
        _
      %p124 = scmp.le.s32.totalorder 1, %s13
      %p125 = scmp.lt.s32.totalorder %s13, 3
      %p126 = pnand %p124, %p125
      %p127 = pneg %p126
      // Predicated region
      $region21: #{tpu_custom_call.1} parent=5 // pred_check
        _
      $region22: #{tpu_custom_call.1} parent=5 // pred_check_branch
        %129 = sbr.rel (%p126) target = $region24
      $region23: #{tpu_custom_call.1} parent=5 // pred_region
        %s130 = ssub.s32 %s13, 1
        %s131 = sand.u32 %s40, 1
        %s132 = scalar_lea.sflag [#allocation3], %s131
        %s133 = sand.u32 %s40, 1
        %s134 = smul.addr %s133, 64
        %s135 = scalar_lea.vmem [#allocation2], %s134
        // Predicated region
        $region25: #{tpu_custom_call.1} parent=23 // pred_check
          %p136 = pneg %p53
        $region26: #{tpu_custom_call.1} parent=23 // pred_check_branch
          %138 = sbr.rel (%p136) target = $region28
        $region27: #{tpu_custom_call.1} parent=23 // pred_region
          %140 = dma.done %s132, 1024
        $region28: #{tpu_custom_call.1} parent=23 // pred_fallthru
          _
        %s141 = sand.u32 %s40, 1
        %s142 = scalar_lea.sflag [#allocation3], %s141
        %s143 = sand.u32 %s40, 1
        %s144 = smul.addr %s143, 64
        %s145 = scalar_lea.vmem [#allocation2], %s144
        %p146 = pneg %p53
        %p147 = pneg %p50
        %p148 = pneg %p81
        %p149 = pneg %p78
        %s150 = sand.u32 %s68, 1
        %s151 = scalar_lea.sflag [#allocation4], %s150
        %s152 = sand.u32 %s68, 1
        %s153 = smul.addr %s152, 16
        %s154 = scalar_lea.vmem [#allocation5], %s153
        %s155 = smul.u32 2, %s23
        %s156 = smul.u32 2, %s23
        loop: start=0, step=1, limit=4
        $region29: #{tpu_custom_call.1} parent=23 // loop_pre_header
          _
        $region30: #{tpu_custom_call.1} parent=23 // loop_header
          %s158 = sphi 0, %s162
          %p159 = scmp.ge.s32.totalorder %s158, 4
        $region31: #{tpu_custom_call.1} parent=23 // loop_header_branch
          %161 = sbr.rel (%p159) target = $region35
        $region32: #{tpu_custom_call.1} parent=23 // loop_body
          %s163 = smul.u32 %s158, 4
          %s164 = scalar_lea.vmem %s135, %s163 [#allocation2]
          %v165 = vld [vmem:[%s164] sm:$0xf]
          %s166 = sadd.s32 %s163, 16
          %s167 = scalar_lea.vmem %s135, %s166 [#allocation2]
          %v168 = vld [vmem:[%s167] sm:$0xf]
          %s169 = sadd.s32 %s163, 32
          %s170 = scalar_lea.vmem %s135, %s169 [#allocation2]
          %v171 = vld [vmem:[%s170] sm:$0xf]
          %s172 = sadd.s32 %s163, 48
          %s173 = scalar_lea.vmem %s135, %s172 [#allocation2]
          %v174 = vld [vmem:[%s173] sm:$0xf]
          %v176 = vrot.slane %v165, 1
          %177 = vrot.lane.b32.xlu0 %v176, 4
          %v178 = vpop.permute.xlu0 %177
          %v180 = vrot.slane %v165, 2
          %181 = vrot.lane.b32.xlu0 %v180, 8
          %v182 = vpop.permute.xlu0 %181
          %v184 = vrot.slane %v165, 3
          %185 = vrot.lane.b32.xlu0 %v184, 12
          %v186 = vpop.permute.xlu0 %185
          %vm188 = vcmask 31744
          %v189 = vsel %vm188, %v165, %v178
          %vm190 = vcmask 64512
          %v191 = vsel %vm190, %v189, %v182
          %vm192 = vcmask 97280
          %v193 = vsel %vm192, %v191, %v186
          %v195 = vrot.slane %v168, 1
          %196 = vrot.lane.b32.xlu0 %v195, 4
          %v197 = vpop.permute.xlu0 %196
          %v199 = vrot.slane %v168, 2
          %200 = vrot.lane.b32.xlu0 %v199, 8
          %v201 = vpop.permute.xlu0 %200
          %v203 = vrot.slane %v168, 3
          %204 = vrot.lane.b32.xlu0 %v203, 12
          %v205 = vpop.permute.xlu0 %204
          %v207 = vsel %vm188, %v168, %v197
          %v208 = vsel %vm190, %v207, %v201
          %v209 = vsel %vm192, %v208, %v205
          %v211 = vrot.slane %v171, 1
          %212 = vrot.lane.b32.xlu0 %v211, 4
          %v213 = vpop.permute.xlu0 %212
          %v215 = vrot.slane %v171, 2
          %216 = vrot.lane.b32.xlu0 %v215, 8
          %v217 = vpop.permute.xlu0 %216
          %v219 = vrot.slane %v171, 3
          %220 = vrot.lane.b32.xlu0 %v219, 12
          %v221 = vpop.permute.xlu0 %220
          %v223 = vsel %vm188, %v171, %v213
          %v224 = vsel %vm190, %v223, %v217
          %v225 = vsel %vm192, %v224, %v221
          %v227 = vrot.slane %v174, 1
          %228 = vrot.lane.b32.xlu0 %v227, 4
          %v229 = vpop.permute.xlu0 %228
          %v231 = vrot.slane %v174, 2
          %232 = vrot.lane.b32.xlu0 %v231, 8
          %v233 = vpop.permute.xlu0 %232
          %v235 = vrot.slane %v174, 3
          %236 = vrot.lane.b32.xlu0 %v235, 12
          %v237 = vpop.permute.xlu0 %236
          %v239 = vsel %vm188, %v174, %v229
          %v240 = vsel %vm190, %v239, %v233
          %v241 = vsel %vm192, %v240, %v237
          %243 = vrot.lane.b32.xlu0 %v209, 16
          %v244 = vpop.permute.xlu0 %243
          %247 = vrot.lane.b32.xlu0 %v225, 32
          %v248 = vpop.permute.xlu0 %247
          %251 = vrot.lane.b32.xlu0 %v241, 48
          %v252 = vpop.permute.xlu0 %251
          %vm254 = vcmask 130048
          %v255 = vsel %vm254, %v193, %v244
          %vm256 = vcmask 261120
          %v257 = vsel %vm256, %v255, %v248
          %vm258 = vcmask 392192
          %v259 = vsel %vm258, %v257, %v252
          %260 = vrot.lane.b32.xlu0 %v165, 124
          %v261 = vpop.permute.xlu0 %260
          %264 = vrot.lane.b32.xlu0 %v180, 4
          %v265 = vpop.permute.xlu0 %264
          %267 = vrot.lane.b32.xlu0 %v184, 8
          %v268 = vpop.permute.xlu0 %267
          %v270 = vsel %vm188, %v261, %v176
          %v271 = vsel %vm190, %v270, %v265
          %v272 = vsel %vm192, %v271, %v268
          %273 = vrot.lane.b32.xlu0 %v168, 124
          %v274 = vpop.permute.xlu0 %273
          %277 = vrot.lane.b32.xlu0 %v199, 4
          %v278 = vpop.permute.xlu0 %277
          %280 = vrot.lane.b32.xlu0 %v203, 8
          %v281 = vpop.permute.xlu0 %280
          %v283 = vsel %vm188, %v274, %v195
          %v284 = vsel %vm190, %v283, %v278
          %v285 = vsel %vm192, %v284, %v281
          %286 = vrot.lane.b32.xlu0 %v171, 124
          %v287 = vpop.permute.xlu0 %286
          %290 = vrot.lane.b32.xlu0 %v215, 4
          %v291 = vpop.permute.xlu0 %290
          %293 = vrot.lane.b32.xlu0 %v219, 8
          %v294 = vpop.permute.xlu0 %293
          %v296 = vsel %vm188, %v287, %v211
          %v297 = vsel %vm190, %v296, %v291
          %v298 = vsel %vm192, %v297, %v294
          %299 = vrot.lane.b32.xlu0 %v174, 124
          %v300 = vpop.permute.xlu0 %299
          %303 = vrot.lane.b32.xlu0 %v231, 4
          %v304 = vpop.permute.xlu0 %303
          %306 = vrot.lane.b32.xlu0 %v235, 8
          %v307 = vpop.permute.xlu0 %306
          %v309 = vsel %vm188, %v300, %v227
          %v310 = vsel %vm190, %v309, %v304
          %v311 = vsel %vm192, %v310, %v307
          %313 = vrot.lane.b32.xlu0 %v285, 16
          %v314 = vpop.permute.xlu0 %313
          %317 = vrot.lane.b32.xlu0 %v298, 32
          %v318 = vpop.permute.xlu0 %317
          %321 = vrot.lane.b32.xlu0 %v311, 48
          %v322 = vpop.permute.xlu0 %321
          %v324 = vsel %vm254, %v272, %v314
          %v325 = vsel %vm256, %v324, %v318
          %v326 = vsel %vm258, %v325, %v322
          %327 = vrot.lane.b32.xlu0 %v165, 120
          %v328 = vpop.permute.xlu0 %327
          %330 = vrot.lane.b32.xlu0 %v176, 124
          %v331 = vpop.permute.xlu0 %330
          %334 = vrot.lane.b32.xlu0 %v184, 4
          %v335 = vpop.permute.xlu0 %334
          %v337 = vsel %vm188, %v328, %v331
          %v338 = vsel %vm190, %v337, %v180
          %v339 = vsel %vm192, %v338, %v335
          %340 = vrot.lane.b32.xlu0 %v168, 120
          %v341 = vpop.permute.xlu0 %340
          %343 = vrot.lane.b32.xlu0 %v195, 124
          %v344 = vpop.permute.xlu0 %343
          %347 = vrot.lane.b32.xlu0 %v203, 4
          %v348 = vpop.permute.xlu0 %347
          %v350 = vsel %vm188, %v341, %v344
          %v351 = vsel %vm190, %v350, %v199
          %v352 = vsel %vm192, %v351, %v348
          %353 = vrot.lane.b32.xlu0 %v171, 120
          %v354 = vpop.permute.xlu0 %353
          %356 = vrot.lane.b32.xlu0 %v211, 124
          %v357 = vpop.permute.xlu0 %356
          %360 = vrot.lane.b32.xlu0 %v219, 4
          %v361 = vpop.permute.xlu0 %360
          %v363 = vsel %vm188, %v354, %v357
          %v364 = vsel %vm190, %v363, %v215
          %v365 = vsel %vm192, %v364, %v361
          %366 = vrot.lane.b32.xlu0 %v174, 120
          %v367 = vpop.permute.xlu0 %366
          %369 = vrot.lane.b32.xlu0 %v227, 124
          %v370 = vpop.permute.xlu0 %369
          %373 = vrot.lane.b32.xlu0 %v235, 4
          %v374 = vpop.permute.xlu0 %373
          %v376 = vsel %vm188, %v367, %v370
          %v377 = vsel %vm190, %v376, %v231
          %v378 = vsel %vm192, %v377, %v374
          %380 = vrot.lane.b32.xlu0 %v352, 16
          %v381 = vpop.permute.xlu0 %380
          %384 = vrot.lane.b32.xlu0 %v365, 32
          %v385 = vpop.permute.xlu0 %384
          %388 = vrot.lane.b32.xlu0 %v378, 48
          %v389 = vpop.permute.xlu0 %388
          %v391 = vsel %vm254, %v339, %v381
          %v392 = vsel %vm256, %v391, %v385
          %v393 = vsel %vm258, %v392, %v389
          %394 = vrot.lane.b32.xlu0 %v165, 116
          %v395 = vpop.permute.xlu0 %394
          %397 = vrot.lane.b32.xlu0 %v176, 120
          %v398 = vpop.permute.xlu0 %397
          %400 = vrot.lane.b32.xlu0 %v180, 124
          %v401 = vpop.permute.xlu0 %400
          %v404 = vsel %vm188, %v395, %v398
          %v405 = vsel %vm190, %v404, %v401
          %v406 = vsel %vm192, %v405, %v184
          %407 = vrot.lane.b32.xlu0 %v168, 116
          %v408 = vpop.permute.xlu0 %407
          %410 = vrot.lane.b32.xlu0 %v195, 120
          %v411 = vpop.permute.xlu0 %410
          %413 = vrot.lane.b32.xlu0 %v199, 124
          %v414 = vpop.permute.xlu0 %413
          %v417 = vsel %vm188, %v408, %v411
          %v418 = vsel %vm190, %v417, %v414
          %v419 = vsel %vm192, %v418, %v203
          %420 = vrot.lane.b32.xlu0 %v171, 116
          %v421 = vpop.permute.xlu0 %420
          %423 = vrot.lane.b32.xlu0 %v211, 120
          %v424 = vpop.permute.xlu0 %423
          %426 = vrot.lane.b32.xlu0 %v215, 124
          %v427 = vpop.permute.xlu0 %426
          %v430 = vsel %vm188, %v421, %v424
          %v431 = vsel %vm190, %v430, %v427
          %v432 = vsel %vm192, %v431, %v219
          %433 = vrot.lane.b32.xlu0 %v174, 116
          %v434 = vpop.permute.xlu0 %433
          %436 = vrot.lane.b32.xlu0 %v227, 120
          %v437 = vpop.permute.xlu0 %436
          %439 = vrot.lane.b32.xlu0 %v231, 124
          %v440 = vpop.permute.xlu0 %439
          %v443 = vsel %vm188, %v434, %v437
          %v444 = vsel %vm190, %v443, %v440
          %v445 = vsel %vm192, %v444, %v235
          %447 = vrot.lane.b32.xlu0 %v419, 16
          %v448 = vpop.permute.xlu0 %447
          %451 = vrot.lane.b32.xlu0 %v432, 32
          %v452 = vpop.permute.xlu0 %451
          %455 = vrot.lane.b32.xlu0 %v445, 48
          %v456 = vpop.permute.xlu0 %455
          %v458 = vsel %vm254, %v406, %v448
          %v459 = vsel %vm256, %v458, %v452
          %v460 = vsel %vm258, %v459, %v456
          %v462 = vrot.slane %v326, 7
          %v465 = vrot.slane %v393, 6
          %v468 = vrot.slane %v460, 5
          %vm470 = vcmask 1040384
          %v471 = vsel %vm470, %v259, %v462
          %vm472 = vcmask 1041408
          %v473 = vsel %vm472, %v471, %v465
          %vm474 = vcmask 1042432
          %v475 = vsel %vm474, %v473, %v468
          %s476 = scalar_lea.vmem %s154, %s163 [#allocation5]
          %vm477 = vcmask 519168
          %478 = vst.msk [vmem:[%s476] sm:$0xf] %vm477, %v475
        $region33: #{tpu_custom_call.1} parent=23 // loop_footer
          %s162 = sadd.s32 1, %s158
        $region34: #{tpu_custom_call.1} parent=23 // loop_footer_branch
          %157 = sbr.rel target = $region30
        $region35: #{tpu_custom_call.1} parent=23 // loop_exit
          _
        %s479 = sand.u32 %s68, 1
        %s480 = scalar_lea.sflag [#allocation4], %s479
        %s481 = sand.u32 %s68, 1
        %s482 = smul.addr %s481, 16
        %s483 = scalar_lea.vmem [#allocation5], %s482
        // Predicated region
        $region36: #{tpu_custom_call.1} parent=23 // pred_check
          %p484 = pneg %p78
        $region37: #{tpu_custom_call.1} parent=23 // pred_check_branch
          %486 = sbr.rel (%p484) target = $region39
        $region38: #{tpu_custom_call.1} parent=23 // pred_region
          %s487 = smul.u32 2, %s23
          %489 = vsyncadd %s480, 0
          %s490 = smul.addr %s22, 2
          %s491 = sadd.s32 %s487, %s490
          %s492 = smul.addr %s491, 8
          %s493 = scalar_lea.hbm %s1, %s492
          %s494 = sshll.u32 %s483, 4
          %s495 = int_to_ptr.vmem [resolvable:$true] %s494
          %s496 = sshll.u32 %s493, 4
          %s497 = int_to_ptr.hbm [resolvable:$true] %s496
          %502 = dma.vmem_to_hbm [thread:$0]  %s495, 256, %s497, %s480, 128, 128, 8
        $region39: #{tpu_custom_call.1} parent=23 // pred_fallthru
          _
      $region24: #{tpu_custom_call.1} parent=5 // pred_fallthru
        _
      %p503 = scmp.le.s32.totalorder 2, %s13
      // Predicated region
      $region40: #{tpu_custom_call.1} parent=5 // pred_check
        %p504 = pneg %p503
      $region41: #{tpu_custom_call.1} parent=5 // pred_check_branch
        %506 = sbr.rel (%p504) target = $region43
      $region42: #{tpu_custom_call.1} parent=5 // pred_region
        %s507 = ssub.s32 %s13, 2
        // Predicated region
        $region44: #{tpu_custom_call.1} parent=42 // pred_check
          %p508 = pneg %p84
        $region45: #{tpu_custom_call.1} parent=42 // pred_check_branch
          %510 = sbr.rel (%p508) target = $region47
        $region46: #{tpu_custom_call.1} parent=42 // pred_region
          %s511 = sand.u32 %s69, 1
          %s512 = scalar_lea.sflag [#allocation4], %s511
          %s513 = sand.u32 %s69, 1
          %s514 = smul.addr %s513, 16
          %s515 = scalar_lea.vmem [#allocation5], %s514
          %517 = dma.done %s512, 256
        $region47: #{tpu_custom_call.1} parent=42 // pred_fallthru
          _
      $region43: #{tpu_custom_call.1} parent=5 // pred_fallthru
        _
    $region6: #{tpu_custom_call.1} parent=1 // loop_footer
      %s17 = sadd.s32 1, %s13
    $region7: #{tpu_custom_call.1} parent=1 // loop_footer_branch
      %12 = sbr.rel target = $region3
    $region8: #{tpu_custom_call.1} parent=1 // loop_exit
      _
    %518 = vsyncpa [#allocation3], 1
    %s519 = scalar_lea.sflag [#allocation3], 1
    %520 = vsyncpa %s519, 1
    %521 = vsyncpa [#allocation4], 1
    %s522 = scalar_lea.sflag [#allocation4], 1
    %523 = vsyncpa %s522, 1

</llo_original>
